<compile_context>
chip_gen: v5e
topology: v5e:2x2
jax: 0.10.0
libtpu: 0.0.40
codegen_flags: <defaults>
</compile_context>

<pallas_src>
import functools

import jax
import jax.numpy as jnp
from jax.experimental import pallas as pl
from jax.experimental.pallas import tpu as pltpu

_LANE = 128
_SUBLANE = 8


def _round_up(n, m):
    return ((n + m - 1) // m) * m


def _pad_axis(a, axis, new_size):
    if a.shape[axis] == new_size:
        return a
    pads = [(0, 0)] * a.ndim
    pads[axis] = (0, new_size - a.shape[axis])
    return jnp.pad(a, pads)


def _pad_mlp_params(params, hp):
    w1, b1, w2, b2 = params
    w1 = _pad_axis(_pad_axis(w1, 0, hp), 1, hp)
    w2 = _pad_axis(_pad_axis(w2, 0, hp), 1, hp)
    b1 = _pad_axis(b1, 1, hp)
    b2 = _pad_axis(b2, 1, hp)
    return w1, b1, w2, b2


# ------------------------- Pallas kernels -------------------------

def _mlp_body(x, w1_ref, b1_ref, w2_ref, b2_ref):
    h = jnp.tanh(
        jnp.dot(x, w1_ref[...], preferred_element_type=jnp.float32) + b1_ref[...]
    )
    return jnp.dot(h, w2_ref[...], preferred_element_type=jnp.float32) + b2_ref[...]


def _mlp_kernel(x_ref, w1_ref, b1_ref, w2_ref, b2_ref, o_ref):
    """y = tanh(x @ W1 + b1) @ W2 + b2  (single network, lane-dense output)."""
    o_ref[...] = _mlp_body(x_ref[...], w1_ref, b1_ref, w2_ref, b2_ref).astype(o_ref.dtype)


def _fused_sde_kernel(x_ref,
                      fw1, fb1, fw2, fb2,
                      gw1, gb1, gw2, gb2,
                      f_ref, g_ref):
    """Both nets in one kernel: x loaded once, two lane-dense (B, H) outputs."""
    x = x_ref[...]
    f_ref[...] = _mlp_body(x, fw1, fb1, fw2, fb2).astype(f_ref.dtype)
    g_ref[...] = _mlp_body(x, gw1, gb1, gw2, gb2).astype(g_ref.dtype)


# ------------------------- wrappers -------------------------

def _common_specs(bb, hp):
    x_spec = pl.BlockSpec((bb, hp), lambda i: (i, 0))     # batch-tiled activations
    w_spec = pl.BlockSpec((hp, hp), lambda i: (0, 0))     # weights resident
    b_spec = pl.BlockSpec((1, hp), lambda i: (0, 0))      # biases resident
    return x_spec, w_spec, b_spec


def _pad_inputs(x, block_b):
    b, h = x.shape
    hp = _round_up(max(h, _LANE), _LANE)                  # lane-dense hidden
    bb = min(block_b, _round_up(b, _SUBLANE))             # 8-row-aligned batch tile
    bp = _round_up(b, bb)
    xp = _pad_axis(_pad_axis(x, 0, bp), 1, hp)
    return xp, bp, bb, hp


@functools.partial(jax.jit, static_argnames=("block_b",))
def mlp_pallas(x, params, block_b=256):
    """Single-network path (used when only f or only g is requested)."""
    b, h = x.shape
    xp, bp, bb, hp = _pad_inputs(x, block_b)
    w1, b1, w2, b2 = _pad_mlp_params(params, hp)
    x_spec, w_spec, b_spec = _common_specs(bb, hp)
    out = pl.pallas_call(
        _mlp_kernel,
        out_shape=jax.ShapeDtypeStruct((bp, hp), x.dtype),
        grid=(bp // bb,),
        in_specs=[x_spec, w_spec, b_spec, w_spec, b_spec],
        out_specs=x_spec,
        compiler_params=pltpu.CompilerParams(
            dimension_semantics=("parallel",)),
    )(xp, w1, b1, w2, b2)
    return out[:b, :h]


@functools.partial(jax.jit, static_argnames=("block_b",))
def fused_sde_pallas(x, f_params, g_params, block_b=256):
    """Fused path: one pallas_call computes f_func(x) and diag(g_func(x))."""
    b, h = x.shape
    xp, bp, bb, hp = _pad_inputs(x, block_b)
    fp = _pad_mlp_params(f_params, hp)
    gp = _pad_mlp_params(g_params, hp)
    x_spec, w_spec, b_spec = _common_specs(bb, hp)
    mlp_specs = [w_spec, b_spec, w_spec, b_spec]
    f_out, g_diag = pl.pallas_call(
        _fused_sde_kernel,
        out_shape=(jax.ShapeDtypeStruct((bp, hp), x.dtype),
                   jax.ShapeDtypeStruct((bp, hp), x.dtype)),
        grid=(bp // bb,),
        in_specs=[x_spec] + mlp_specs + mlp_specs,
        out_specs=(x_spec, x_spec),
        compiler_params=pltpu.CompilerParams(
            dimension_semantics=("parallel",)),
    )(xp, *fp, *gp)
    return f_out[:b, :h], g_diag[:b, :h]


def _diag_embed(d):
    """diag_embed of a (B, H) diagonal, built outside the kernel (lane-dense kernel output)."""
    h = d.shape[-1]
    eye = jnp.eye(h, dtype=bool)
    return jnp.where(eye, d[:, :, None], jnp.zeros((), d.dtype))


class SDEFuncPallas:
    """JAX/Pallas port of SDEFunc.  f_func / g_func are 2-layer MLPs whose
    weights are stored as (in, out) so the kernel does x @ W (equivalent to
    PyTorch's x @ W.T with W of shape (out, in))."""

    def __init__(self, f_params, g_params, order=1):
        self.order, self.intloss, self.sensitivity = order, None, None
        self.f_params, self.g_params = f_params, g_params
        self.fnfe, self.gnfe = 0, 0

    def forward(self, s, x):
        # Original PyTorch forward() is `pass` (no-op).
        pass

    def f(self, s, x):
        """Posterior drift: f_func(x).  `s` is unused, matching the reference."""
        self.fnfe += 1
        return mlp_pallas(x, self.f_params)

    def g(self, s, x):
        """Diffusion: g_func(x).diag_embed()."""
        self.gnfe += 1
        d = mlp_pallas(x, self.g_params)   # kernel emits only the (B, H) diagonal
        return _diag_embed(d)

    def f_and_g(self, s, x):
        """Fused fast path (recommended for SDE solvers that need both per step)."""
        self.fnfe += 1
        self.gnfe += 1
        f_out, g_diag = fused_sde_pallas(x, self.f_params, self.g_params)
        return f_out, _diag_embed(g_diag)


# ------------------------- demo / check -------------------------

def _init_mlp_params(key, hidden, dtype=jnp.float32):
    k1, k2 = jax.random.split(key)
    scale = 1.0 / jnp.sqrt(hidden)
    w1 = jax.random.uniform(k1, (hidden, hidden), dtype, -scale, scale)
    w2 = jax.random.uniform(k2, (hidden, hidden), dtype, -scale, scale)
    b1 = jnp.zeros((1, hidden), dtype)
    b2 = jnp.zeros((1, hidden), dtype)
    return (w1, b1, w2, b2)


if __name__ == "__main__":
    B, H = 8, 32
    key = jax.random.PRNGKey(0)
    kx, kf, kg = jax.random.split(key, 3)

    x = jax.random.normal(kx, (B, H), jnp.float32)
    f_params = _init_mlp_params(kf, H)
    g_params = _init_mlp_params(kg, H)

    sde = SDEFuncPallas(f_params, g_params, order=1)

    s = jnp.float32(0.0)  # time, unused by f/g (matches reference semantics)

    drift = sde.f(s, x)                      # (B, H)
    diffusion = sde.g(s, x)                  # (B, H, H), diagonal
    drift_fused, diffusion_fused = sde.f_and_g(s, x)   # fused single-launch path

    jax.block_until_ready(drift)
    jax.block_until_ready(diffusion)
    jax.block_until_ready(drift_fused)
    jax.block_until_ready(diffusion_fused)

    # reference check in plain JAX
    def ref_mlp(x, w1, b1, w2, b2):
        return jnp.tanh(x @ w1 + b1) @ w2 + b2

    ref_f = ref_mlp(x, *f_params)
    ref_g = jax.vmap(jnp.diag)(ref_mlp(x, *g_params))

    assert drift.shape == (B, H) and diffusion.shape == (B, H, H)
    assert jnp.allclose(drift, ref_f, atol=1e-5, rtol=1e-5)
    assert jnp.allclose(diffusion, ref_g, atol=1e-5, rtol=1e-5)
    assert jnp.allclose(drift_fused, ref_f, atol=1e-5, rtol=1e-5)
    assert jnp.allclose(diffusion_fused, ref_g, atol=1e-5, rtol=1e-5)
    assert sde.fnfe == 2 and sde.gnfe == 2

    print("KERNEL_OK")
</pallas_src>

<mosaic_0001>
module attributes {stable_mosaic.version = 11 : i64} {
  func.func @_mlp_kernel(%arg0: i32, %arg1: memref<8x128xf32, #tpu.memory_space<vmem>>, %arg2: memref<128x128xf32, #tpu.memory_space<vmem>>, %arg3: memref<1x128xf32, #tpu.memory_space<vmem>>, %arg4: memref<128x128xf32, #tpu.memory_space<vmem>>, %arg5: memref<1x128xf32, #tpu.memory_space<vmem>>, %arg6: memref<8x128xf32, #tpu.memory_space<vmem>>) attributes {dimension_semantics = [#tpu.dimension_semantics<parallel>], iteration_bounds = array<i64: 1>, scalar_prefetch = 0 : i64, scratch_operands = 0 : i64, tpu.core_type = #tpu.core_type<tc>, window_params = [{transform_indices = @transform_0, window_bounds = array<i64: 8, 128>}, {pipeline_mode = #tpu.pipeline_mode<synchronous>, transform_indices = @transform_1, window_bounds = array<i64: 128, 128>}, {pipeline_mode = #tpu.pipeline_mode<synchronous>, transform_indices = @transform_2, window_bounds = array<i64: 1, 128>}, {pipeline_mode = #tpu.pipeline_mode<synchronous>, transform_indices = @transform_3, window_bounds = array<i64: 128, 128>}, {pipeline_mode = #tpu.pipeline_mode<synchronous>, transform_indices = @transform_4, window_bounds = array<i64: 1, 128>}, {transform_indices = @transform_5, window_bounds = array<i64: 8, 128>}]} {
    %c0 = arith.constant 0 : index
    %c0_0 = arith.constant 0 : index
    %0 = vector.load %arg1[%c0, %c0_0] : memref<8x128xf32, #tpu.memory_space<vmem>>, vector<8x128xf32>
    %c0_1 = arith.constant 0 : index
    %c0_2 = arith.constant 0 : index
    %1 = vector.load %arg2[%c0_1, %c0_2] : memref<128x128xf32, #tpu.memory_space<vmem>>, vector<128x128xf32>
    %cst = arith.constant dense<0.000000e+00> : vector<8x128xf32>
    %2 = tpu.matmul %0, %1, %cst {dimension_numbers = #tpu.dot_dimension_numbers<[1], [0], [0], [1], [0, 0, 1, 1], [], []>} : vector<8x128xf32>, vector<128x128xf32>, vector<8x128xf32> -> vector<8x128xf32>
    %c0_3 = arith.constant 0 : index
    %c0_4 = arith.constant 0 : index
    %3 = vector.load %arg3[%c0_3, %c0_4] : memref<1x128xf32, #tpu.memory_space<vmem>>, vector<1x128xf32>
    %4 = vector.broadcast %3 : vector<1x128xf32> to vector<8x128xf32>
    %5 = arith.addf %2, %4 : vector<8x128xf32>
    %6 = math.tanh %5 : vector<8x128xf32>
    %c0_5 = arith.constant 0 : index
    %c0_6 = arith.constant 0 : index
    %7 = vector.load %arg4[%c0_5, %c0_6] : memref<128x128xf32, #tpu.memory_space<vmem>>, vector<128x128xf32>
    %cst_7 = arith.constant dense<0.000000e+00> : vector<8x128xf32>
    %8 = tpu.matmul %6, %7, %cst_7 {dimension_numbers = #tpu.dot_dimension_numbers<[1], [0], [0], [1], [0, 0, 1, 1], [], []>} : vector<8x128xf32>, vector<128x128xf32>, vector<8x128xf32> -> vector<8x128xf32>
    %c0_8 = arith.constant 0 : index
    %c0_9 = arith.constant 0 : index
    %9 = vector.load %arg5[%c0_8, %c0_9] : memref<1x128xf32, #tpu.memory_space<vmem>>, vector<1x128xf32>
    %10 = vector.broadcast %9 : vector<1x128xf32> to vector<8x128xf32>
    %11 = arith.addf %8, %10 : vector<8x128xf32>
    %c0_10 = arith.constant 0 : index
    %c0_11 = arith.constant 0 : index
    %12 = vector.load %arg6[%c0_10, %c0_11] : memref<8x128xf32, #tpu.memory_space<vmem>>, vector<8x128xf32>
    tpu.vector_store %arg6[%c0_10, %c0_11], %11 {strides = array<i32>} : memref<8x128xf32, #tpu.memory_space<vmem>>, vector<8x128xf32>,
    return
  }
  func.func @transform_0(%arg0: i32) -> (i32, i32) {
    %c0_i32 = arith.constant 0 : i32
    %c0_i32_0 = arith.constant 0 : i32
    return %arg0, %c0_i32 : i32, i32
  }
  func.func @transform_1(%arg0: i32) -> (i32, i32) {
    %c0_i32 = arith.constant 0 : i32
    %c0_i32_0 = arith.constant 0 : i32
    %c0_i32_1 = arith.constant 0 : i32
    return %c0_i32, %c0_i32_0 : i32, i32
  }
  func.func @transform_2(%arg0: i32) -> (i32, i32) {
    %c0_i32 = arith.constant 0 : i32
    %c0_i32_0 = arith.constant 0 : i32
    %c0_i32_1 = arith.constant 0 : i32
    return %c0_i32, %c0_i32_0 : i32, i32
  }
  func.func @transform_3(%arg0: i32) -> (i32, i32) {
    %c0_i32 = arith.constant 0 : i32
    %c0_i32_0 = arith.constant 0 : i32
    %c0_i32_1 = arith.constant 0 : i32
    return %c0_i32, %c0_i32_0 : i32, i32
  }
  func.func @transform_4(%arg0: i32) -> (i32, i32) {
    %c0_i32 = arith.constant 0 : i32
    %c0_i32_0 = arith.constant 0 : i32
    %c0_i32_1 = arith.constant 0 : i32
    return %c0_i32, %c0_i32_0 : i32, i32
  }
  func.func @transform_5(%arg0: i32) -> (i32, i32) {
    %c0_i32 = arith.constant 0 : i32
    %c0_i32_0 = arith.constant 0 : i32
    return %arg0, %c0_i32 : i32, i32
  }
}

</mosaic_0001>

<llo_original>
// kernel: mlp_pallas.1
$region0: #{mlp_pallas.1}
  #allocation0 [shape = 'u32[]', space=smem, size = 0x4, offset = 0x4, fixed_abs, tag = 'smem constant byte address 0x4 - core index']
  #allocation1 [shape = 'u32[72,128]{1,0:T(1,128)}', space=vmem, size = 0x9000, scoped, tag = 'internal scratch']
  %s0 = inlined_call_operand.vmem [shape: f32[8,128], index: 0, kind: input, shape index: {}]
  %s1 = inlined_call_operand.vmem [shape: f32[128,128], index: 1, kind: input, shape index: {}]
  %s2 = inlined_call_operand.vmem [shape: f32[1,128], index: 2, kind: input, shape index: {}]
  %s3 = inlined_call_operand.vmem [shape: f32[128,128], index: 3, kind: input, shape index: {}]
  %s4 = inlined_call_operand.vmem [shape: f32[1,128], index: 4, kind: input, shape index: {}]
  %s5 = inlined_call_operand.hbm [shape: f32[8,128], index: 5, kind: output, shape index: {}]
  %s6 = sld [smem:[#allocation0]]
  $region30: #{mlp_pallas.1} parent=0
    _
  %s8 = ssub.s32 1, %s6
  %s9 = scalar_select 0, %s8, %s6
  $region1: #{mlp_pallas.1} parent=0
    #allocation2 [shape = 'u8[4096]{0}', space=vmem, size = 0x1000, scoped, tag = 'output window, operand 0, single buffered']
    #allocation3 [shape = 's32[1]{0}', space=sflag, size = 0x4, scoped, tag = 'scoped memory for mlp_pallas.1']
    %10 = vsyncpa [#allocation3], 0
    // Predicated region
    $region2: #{mlp_pallas.1} parent=1 // pred_check
      _
    $region3: #{mlp_pallas.1} parent=1 // pred_check_branch
      %12 = sbr.rel (0) target = $region5
    $region4: #{mlp_pallas.1} parent=1 // pred_region
      _
    $region5: #{mlp_pallas.1} parent=1 // pred_fallthru
      _
    // Predicated region
    $region6: #{mlp_pallas.1} parent=1 // pred_check
      _
    $region7: #{mlp_pallas.1} parent=1 // pred_check_branch
      %14 = sbr.rel (0) target = $region9
    $region8: #{mlp_pallas.1} parent=1 // pred_region
      _
    $region9: #{mlp_pallas.1} parent=1 // pred_fallthru
      _
    // Predicated region
    $region10: #{mlp_pallas.1} parent=1 // pred_check
      _
    $region11: #{mlp_pallas.1} parent=1 // pred_check_branch
      %16 = sbr.rel (0) target = $region13
    $region12: #{mlp_pallas.1} parent=1 // pred_region
      _
    $region13: #{mlp_pallas.1} parent=1 // pred_fallthru
      _
    // Predicated region
    $region14: #{mlp_pallas.1} parent=1 // pred_check
      _
    $region15: #{mlp_pallas.1} parent=1 // pred_check_branch
      %18 = sbr.rel (0) target = $region17
    $region16: #{mlp_pallas.1} parent=1 // pred_region
      _
    $region17: #{mlp_pallas.1} parent=1 // pred_fallthru
      _
    // Predicated region
    $region18: #{mlp_pallas.1} parent=1 // pred_check
      _
    $region19: #{mlp_pallas.1} parent=1 // pred_check_branch
      %20 = sbr.rel (0) target = $region21
    $region20: #{mlp_pallas.1} parent=1 // pred_region
      _
    $region21: #{mlp_pallas.1} parent=1 // pred_fallthru
      _
    %v21 = vld [vmem:[%s0] sm:$0xff]
    %v22 = vld [vmem:[%s1] sm:$0xff]
    %v23 = vld [vmem:[%s1 + $0x8] sm:$0xff]
    %v24 = vld [vmem:[%s1 + $0x10] sm:$0xff]
    %v25 = vld [vmem:[%s1 + $0x18] sm:$0xff]
    %v26 = vld [vmem:[%s1 + $0x20] sm:$0xff]
    %v27 = vld [vmem:[%s1 + $0x28] sm:$0xff]
    %v28 = vld [vmem:[%s1 + $0x30] sm:$0xff]
    %v29 = vld [vmem:[%s1 + $0x38] sm:$0xff]
    %v30 = vld [vmem:[%s1 + $0x40] sm:$0xff]
    %v31 = vld [vmem:[%s1 + $0x48] sm:$0xff]
    %v32 = vld [vmem:[%s1 + $0x50] sm:$0xff]
    %v33 = vld [vmem:[%s1 + $0x58] sm:$0xff]
    %v34 = vld [vmem:[%s1 + $0x60] sm:$0xff]
    %v35 = vld [vmem:[%s1 + $0x68] sm:$0xff]
    %v36 = vld [vmem:[%s1 + $0x70] sm:$0xff]
    %v37 = vld [vmem:[%s1 + $0x78] sm:$0xff]
    %v38 = vld [vmem:[%s2] sm:$0x1]
    %v40 = vperm.slane %v38, 0
    %42 = vmatpush.msra.mxu0 %v37
    %43 = vmatpush.msra.mxu0 %v36
    %44 = vmatpush.msra.mxu0 %v35
    %45 = vmatpush.msra.mxu0 %v34
    %46 = vmatpush.msra.mxu0 %v33
    %47 = vmatpush.msra.mxu0 %v32
    %48 = vmatpush.msra.mxu0 %v31
    %49 = vmatpush.msra.mxu0 %v30
    %50 = vmatpush.msra.mxu0 %v29
    %51 = vmatpush.msra.mxu0 %v28
    %52 = vmatpush.msra.mxu0 %v27
    %53 = vmatpush.msra.mxu0 %v26
    %54 = vmatpush.msra.mxu0 %v25
    %55 = vmatpush.msra.mxu0 %v24
    %56 = vmatpush.msra.mxu0 %v23
    %57 = vmatpush.msra.mxu0 %v22
    %58 = vmatmul.f32.gmra.mxu0 %v21
    %v59 = vpop.f32.mrf.mxu0
    %v60 = vadd.f32 %v40, %v59
    %61 = vdwg.mxu0
    %v62 = vtanh.pop %v60
    %v63 = vld [vmem:[%s3] sm:$0xff]
    %v64 = vld [vmem:[%s3 + $0x8] sm:$0xff]
    %v65 = vld [vmem:[%s3 + $0x10] sm:$0xff]
    %v66 = vld [vmem:[%s3 + $0x18] sm:$0xff]
    %v67 = vld [vmem:[%s3 + $0x20] sm:$0xff]
    %v68 = vld [vmem:[%s3 + $0x28] sm:$0xff]
    %v69 = vld [vmem:[%s3 + $0x30] sm:$0xff]
    %v70 = vld [vmem:[%s3 + $0x38] sm:$0xff]
    %v71 = vld [vmem:[%s3 + $0x40] sm:$0xff]
    %v72 = vld [vmem:[%s3 + $0x48] sm:$0xff]
    %v73 = vld [vmem:[%s3 + $0x50] sm:$0xff]
    %v74 = vld [vmem:[%s3 + $0x58] sm:$0xff]
    %v75 = vld [vmem:[%s3 + $0x60] sm:$0xff]
    %v76 = vld [vmem:[%s3 + $0x68] sm:$0xff]
    %v77 = vld [vmem:[%s3 + $0x70] sm:$0xff]
    %v78 = vld [vmem:[%s3 + $0x78] sm:$0xff]
    %v79 = vld [vmem:[%s4] sm:$0x1]
    %v81 = vperm.slane %v79, 0
    %83 = vmatpush.msra.mxu0 %v78
    %84 = vmatpush.msra.mxu0 %v77
    %85 = vmatpush.msra.mxu0 %v76
    %86 = vmatpush.msra.mxu0 %v75
    %87 = vmatpush.msra.mxu0 %v74
    %88 = vmatpush.msra.mxu0 %v73
    %89 = vmatpush.msra.mxu0 %v72
    %90 = vmatpush.msra.mxu0 %v71
    %91 = vmatpush.msra.mxu0 %v70
    %92 = vmatpush.msra.mxu0 %v69
    %93 = vmatpush.msra.mxu0 %v68
    %94 = vmatpush.msra.mxu0 %v67
    %95 = vmatpush.msra.mxu0 %v66
    %96 = vmatpush.msra.mxu0 %v65
    %97 = vmatpush.msra.mxu0 %v64
    %98 = vmatpush.msra.mxu0 %v63
    %99 = vmatmul.f32.gmra.mxu0 %v62
    %v100 = vpop.f32.mrf.mxu0
    %v101 = vadd.f32 %v81, %v100
    %102 = vdwg.mxu0
    %103 = vst [vmem:[#allocation2] sm:$0xff] %v101
    // Predicated region
    $region22: #{mlp_pallas.1} parent=1 // pred_check
      _
    $region23: #{mlp_pallas.1} parent=1 // pred_check_branch
      %105 = sbr.rel (0) target = $region25
    $region24: #{mlp_pallas.1} parent=1 // pred_region
      %107 = vsyncadd [#allocation3], 0
      %s109 = sshll.u32 [#allocation2], 4
      %s110 = int_to_ptr.vmem [resolvable:$true] %s109
      %s111 = sshll.u32 %s5, 4
      %s112 = int_to_ptr.hbm [resolvable:$true] %s111
      %114 = dma.vmem_to_hbm [thread:$0]  %s110, 128, %s112, [#allocation3]
    $region25: #{mlp_pallas.1} parent=1 // pred_fallthru
      _
    // Predicated region
    $region26: #{mlp_pallas.1} parent=1 // pred_check
      _
    $region27: #{mlp_pallas.1} parent=1 // pred_check_branch
      %116 = sbr.rel (0) target = $region29
    $region28: #{mlp_pallas.1} parent=1 // pred_region
      %118 = dma.done [#allocation3], 128
    $region29: #{mlp_pallas.1} parent=1 // pred_fallthru
      _
    %119 = vsyncpa [#allocation3], 1

</llo_original>
